<compile_context>
chip_gen: v7x
topology: tpu7x:2x2x1
jax: 0.10.0
libtpu: 0.0.40
codegen_flags: <defaults>
</compile_context>

<pallas_src>
import jax
import jax.numpy as jnp
import numpy as np
from jax.experimental import pallas as pl
from jax.experimental.pallas import tpu as pltpu


def _round_up(n, m):
    return ((n + m - 1) // m) * m


def _pad2(a, rows, cols):
    return jnp.pad(a, ((0, rows - a.shape[0]), (0, cols - a.shape[1])))


def _pick_tile_b(B):
    # Output block is (8, TILE_B) with TILE_B on the LANE axis -> must be a
    # multiple of 128. Cap at 1024 (mem-bound sweet spot), and keep >=2 grid
    # steps whenever possible so v7x's two TensorCores both get batch tiles.
    if B <= 128:
        return 128
    half = _round_up((B + 1) // 2, 128)
    return min(1024, half)


def _disc_kernel(x_ref, w0_ref, b0_ref, w1_ref, b1_ref, w2_ref, b2_ref, o_ref):
    # Hidden layer 0: Linear(emb -> hid) + LeakyReLU(0.2).
    # bf16 x / W0, f32 accumulation on the MXU.
    h = jnp.dot(x_ref[...], w0_ref[...], preferred_element_type=jnp.float32)
    h = h + b0_ref[...]                       # (TILE_B, HP) + (1, HP), f32
    h = jnp.maximum(h, 0.2 * h)               # LeakyReLU(0.2)

    # Hidden layer 1: Linear(hid -> hid) + LeakyReLU(0.2). Cast h to bf16 for MXU.
    h = jnp.dot(h.astype(jnp.bfloat16), w1_ref[...],
                preferred_element_type=jnp.float32)
    h = h + b1_ref[...]
    h = jnp.maximum(h, 0.2 * h)

    # Output layer: Linear(hid -> 1). w2_ref is (8, HP) bf16 with the real
    # weights in row 0 (rows 1..7 are zeros). NT matmul puts the batch tile on
    # the lane axis of the result -> lane-dense unmasked output store.
    logit = jax.lax.dot_general(
        w2_ref[...], h.astype(jnp.bfloat16),
        dimension_numbers=(((1,), (1,)), ((), ())),
        preferred_element_type=jnp.float32)   # (8, TILE_B), f32
    o_ref[...] = jax.nn.sigmoid(logit + b2_ref[0])


def discriminator_forward(x, params):
    """x: (B, emb_dim) float32, params in torch nn.Linear layout. Returns (B,) float32."""
    w0, b0, w1, b1, w2, b2 = params
    B, E = x.shape
    H = w0.shape[0]

    EP = _round_up(E, 128)
    HP = _round_up(H, 128)
    TILE_B = _pick_tile_b(B)
    BP = _round_up(B, TILE_B)

    # Cast x to bf16 first (half-width copy, needed anyway for the MXU); only
    # pad afterwards if shapes actually require alignment. Zero padding is
    # numerically inert: padded hidden lanes stay exactly 0 through LeakyReLU
    # and the next matmul; padded batch rows only pollute discarded columns.
    x_b = x.astype(jnp.bfloat16)
    if (BP, EP) != (B, E):
        x_b = jnp.pad(x_b, ((0, BP - B), (0, EP - E)))

    w0_p = _pad2(w0.T, EP, HP).astype(jnp.bfloat16)            # (EP, HP)
    b0_p = _pad2(b0.reshape(1, -1), 1, HP).astype(jnp.float32)  # (1, HP)
    w1_p = _pad2(w1.T, HP, HP).astype(jnp.bfloat16)            # (HP, HP)
    b1_p = _pad2(b1.reshape(1, -1), 1, HP).astype(jnp.float32)  # (1, HP)
    w2_p = _pad2(w2.reshape(1, -1), 8, HP).astype(jnp.bfloat16)  # (8, HP), row 0 real
    b2_s = b2.reshape(1).astype(jnp.float32)                   # scalar bias -> SMEM

    grid = (BP // TILE_B,)
    const2 = lambda i: (0, 0)

    # VMEM budget: single-buffered bf16 weights + f32 biases, double-buffered
    # x / output tiles, plus headroom for the f32 activation intermediates.
    vmem_est = ((EP * HP + HP * HP + 8 * HP) * 2 + 2 * HP * 4       # weights/biases
                + 2 * TILE_B * EP * 2 + 2 * 8 * TILE_B * 4          # x / out pipelines
                + 3 * TILE_B * HP * 4)                              # h intermediates
    vmem_limit = int(min(max(2 * vmem_est + (8 << 20), 32 << 20), 56 << 20))

    def build(weight_mode):
        def wspec(shape):
            if weight_mode is None:
                return pl.BlockSpec(shape, const2)
            return pl.BlockSpec(shape, const2, pipeline_mode=weight_mode)

        return pl.pallas_call(
            _disc_kernel,
            out_shape=jax.ShapeDtypeStruct((8, BP), jnp.float32),
            grid=grid,
            in_specs=[
                pl.BlockSpec((TILE_B, EP), lambda i: (i, 0)),        # x tile (pipelined)
                wspec((EP, HP)),                                     # W0 (VMEM resident)
                wspec((1, HP)),                                      # b0
                wspec((HP, HP)),                                     # W1 (VMEM resident)
                wspec((1, HP)),                                      # b1
                wspec((8, HP)),                                      # W2 rows
                pl.BlockSpec(memory_space=pltpu.MemorySpace.SMEM),   # b2 scalar
            ],
            out_specs=pl.BlockSpec((8, TILE_B), lambda i: (0, i)),   # batch on lanes
            compiler_params=pltpu.CompilerParams(
                dimension_semantics=("parallel",),
                vmem_limit_bytes=vmem_limit),
        )

    args = (x_b, w0_p, b0_p, w1_p, b1_p, w2_p, b2_s)
    try:
        out = build(pl.Buffered(1))(*args)   # single-buffer the grid-invariant weights
    except Exception:
        # Compatibility fallback: default double-buffered weights (correct, more VMEM).
        out = build(None)(*args)

    return out[0, :B]


def make_params(key, emb_dim, hid_dim, dis_layers):
    """Deterministic synthetic params in torch nn.Linear layout (out, in)."""
    assert dis_layers == 2, "fused kernel hardcodes dis_layers=2 (emb->hid->hid->1)"
    ks = jax.random.split(key, 6)
    s = 0.1
    w0 = s * jax.random.normal(ks[0], (hid_dim, emb_dim), jnp.float32)
    b0 = s * jax.random.normal(ks[1], (hid_dim,), jnp.float32)
    w1 = s * jax.random.normal(ks[2], (hid_dim, hid_dim), jnp.float32)
    b1 = s * jax.random.normal(ks[3], (hid_dim,), jnp.float32)
    w2 = s * jax.random.normal(ks[4], (1, hid_dim), jnp.float32)
    b2 = s * jax.random.normal(ks[5], (1,), jnp.float32)
    return (w0, b0, w1, b1, w2, b2)


def reference_forward(x, params):
    w0, b0, w1, b1, w2, b2 = params
    h = x @ w0.T + b0
    h = jnp.where(h > 0, h, 0.2 * h)
    h = h @ w1.T + b1
    h = jnp.where(h > 0, h, 0.2 * h)
    logit = h @ w2.T + b2
    return jax.nn.sigmoid(logit).reshape(-1)


if __name__ == "__main__":
    # Small shapes consistent with the module:
    #   emb_dim (enc_dim) = 32, dis_hid_dim = 32, dis_layers = 2, batch = 8
    B, EMB, HID, LAYERS = 8, 32, 32, 2

    key = jax.random.PRNGKey(0)
    kx, kp = jax.random.split(key)
    x = jax.random.normal(kx, (B, EMB), jnp.float32)
    params = make_params(kp, EMB, HID, LAYERS)

    y = discriminator_forward(x, params)
    y = jax.block_until_ready(y)

    y_ref = reference_forward(x, params)
    # bf16 operands (f32 accumulation) -> relaxed tolerance vs. the f32 reference.
    np.testing.assert_allclose(np.asarray(y), np.asarray(y_ref), rtol=2e-2, atol=2e-2)
    assert y.shape == (B,)

    print("KERNEL_OK")
</pallas_src>

<mosaic_0001>
module attributes {stable_mosaic.version = 11 : i64} {
  func.func @_disc_kernel(%arg0: i32, %arg1: memref<128x128xbf16, #tpu.memory_space<vmem>>, %arg2: memref<128x128xbf16, #tpu.memory_space<vmem>>, %arg3: memref<1x128xf32, #tpu.memory_space<vmem>>, %arg4: memref<128x128xbf16, #tpu.memory_space<vmem>>, %arg5: memref<1x128xf32, #tpu.memory_space<vmem>>, %arg6: memref<8x128xbf16, #tpu.memory_space<vmem>>, %arg7: memref<1xf32, #tpu.memory_space<smem>>, %arg8: memref<8x128xf32, #tpu.memory_space<vmem>>) attributes {dimension_semantics = [#tpu.dimension_semantics<parallel>], iteration_bounds = array<i64: 1>, scalar_prefetch = 0 : i64, scratch_operands = 0 : i64, tpu.core_type = #tpu.core_type<tc>, window_params = [{transform_indices = @transform_0, window_bounds = array<i64: 128, 128>}, {pipeline_mode = #tpu.pipeline_mode<synchronous>, transform_indices = @transform_1, window_bounds = array<i64: 128, 128>}, {pipeline_mode = #tpu.pipeline_mode<synchronous>, transform_indices = @transform_2, window_bounds = array<i64: 1, 128>}, {pipeline_mode = #tpu.pipeline_mode<synchronous>, transform_indices = @transform_3, window_bounds = array<i64: 128, 128>}, {pipeline_mode = #tpu.pipeline_mode<synchronous>, transform_indices = @transform_4, window_bounds = array<i64: 1, 128>}, {pipeline_mode = #tpu.pipeline_mode<synchronous>, transform_indices = @transform_5, window_bounds = array<i64: 8, 128>}, {transform_indices = @transform_6, window_bounds = array<i64: 1>}, {transform_indices = @transform_7, window_bounds = array<i64: 8, 128>}]} {
    %c0 = arith.constant 0 : index
    %c0_0 = arith.constant 0 : index
    %0 = vector.load %arg1[%c0, %c0_0] : memref<128x128xbf16, #tpu.memory_space<vmem>>, vector<128x128xbf16>
    %c0_1 = arith.constant 0 : index
    %c0_2 = arith.constant 0 : index
    %1 = vector.load %arg2[%c0_1, %c0_2] : memref<128x128xbf16, #tpu.memory_space<vmem>>, vector<128x128xbf16>
    %cst = arith.constant dense<0.000000e+00> : vector<128x128xf32>
    %2 = tpu.matmul %0, %1, %cst {dimension_numbers = #tpu.dot_dimension_numbers<[1], [0], [0], [1], [0, 0, 1, 1], [], []>} : vector<128x128xbf16>, vector<128x128xbf16>, vector<128x128xf32> -> vector<128x128xf32>
    %c0_3 = arith.constant 0 : index
    %c0_4 = arith.constant 0 : index
    %3 = vector.load %arg3[%c0_3, %c0_4] : memref<1x128xf32, #tpu.memory_space<vmem>>, vector<1x128xf32>
    %4 = vector.broadcast %3 : vector<1x128xf32> to vector<128x128xf32>
    %5 = arith.addf %2, %4 : vector<128x128xf32>
    %cst_5 = arith.constant 2.000000e-01 : f32
    %6 = vector.broadcast %cst_5 : f32 to vector<128x128xf32>
    %7 = arith.mulf %6, %5 : vector<128x128xf32>
    %8 = arith.maximumf %5, %7 : vector<128x128xf32>
    %9 = arith.truncf %8 : vector<128x128xf32> to vector<128x128xbf16>
    %c0_6 = arith.constant 0 : index
    %c0_7 = arith.constant 0 : index
    %10 = vector.load %arg4[%c0_6, %c0_7] : memref<128x128xbf16, #tpu.memory_space<vmem>>, vector<128x128xbf16>
    %cst_8 = arith.constant dense<0.000000e+00> : vector<128x128xf32>
    %11 = tpu.matmul %9, %10, %cst_8 {dimension_numbers = #tpu.dot_dimension_numbers<[1], [0], [0], [1], [0, 0, 1, 1], [], []>} : vector<128x128xbf16>, vector<128x128xbf16>, vector<128x128xf32> -> vector<128x128xf32>
    %c0_9 = arith.constant 0 : index
    %c0_10 = arith.constant 0 : index
    %12 = vector.load %arg5[%c0_9, %c0_10] : memref<1x128xf32, #tpu.memory_space<vmem>>, vector<1x128xf32>
    %13 = vector.broadcast %12 : vector<1x128xf32> to vector<128x128xf32>
    %14 = arith.addf %11, %13 : vector<128x128xf32>
    %cst_11 = arith.constant 2.000000e-01 : f32
    %15 = vector.broadcast %cst_11 : f32 to vector<128x128xf32>
    %16 = arith.mulf %15, %14 : vector<128x128xf32>
    %17 = arith.maximumf %14, %16 : vector<128x128xf32>
    %c0_12 = arith.constant 0 : index
    %c0_13 = arith.constant 0 : index
    %18 = vector.load %arg6[%c0_12, %c0_13] : memref<8x128xbf16, #tpu.memory_space<vmem>>, vector<8x128xbf16>
    %19 = arith.truncf %17 : vector<128x128xf32> to vector<128x128xbf16>
    %cst_14 = arith.constant dense<0.000000e+00> : vector<8x128xf32>
    %20 = tpu.matmul %18, %19, %cst_14 {dimension_numbers = #tpu.dot_dimension_numbers<[1], [1], [0], [0], [0, 0, 1, 0], [], []>} : vector<8x128xbf16>, vector<128x128xbf16>, vector<8x128xf32> -> vector<8x128xf32>
    %c0_15 = arith.constant 0 : index
    %21 = memref.load %arg7[%c0_15] : memref<1xf32, #tpu.memory_space<smem>>
    %22 = vector.broadcast %21 : f32 to vector<8x128xf32>
    %23 = arith.addf %20, %22 : vector<8x128xf32>
    %24 = arith.negf %23 : vector<8x128xf32>
    %25 = math.exp %24 : vector<8x128xf32>
    %cst_16 = arith.constant 1.000000e+00 : f32
    %26 = vector.broadcast %cst_16 : f32 to vector<8x128xf32>
    %27 = arith.addf %26, %25 : vector<8x128xf32>
    %28 = arith.divf %26, %27 : vector<8x128xf32>
    %c0_17 = arith.constant 0 : index
    %c0_18 = arith.constant 0 : index
    %29 = vector.load %arg8[%c0_17, %c0_18] : memref<8x128xf32, #tpu.memory_space<vmem>>, vector<8x128xf32>
    tpu.vector_store %arg8[%c0_17, %c0_18], %28 {strides = array<i32>} : memref<8x128xf32, #tpu.memory_space<vmem>>, vector<8x128xf32>,
    return
  }
  func.func @transform_0(%arg0: i32) -> (i32, i32) {
    %c0_i32 = arith.constant 0 : i32
    %c0_i32_0 = arith.constant 0 : i32
    return %arg0, %c0_i32 : i32, i32
  }
  func.func @transform_1(%arg0: i32) -> (i32, i32) {
    %c0_i32 = arith.constant 0 : i32
    %c0_i32_0 = arith.constant 0 : i32
    %c0_i32_1 = arith.constant 0 : i32
    return %c0_i32, %c0_i32_0 : i32, i32
  }
  func.func @transform_2(%arg0: i32) -> (i32, i32) {
    %c0_i32 = arith.constant 0 : i32
    %c0_i32_0 = arith.constant 0 : i32
    %c0_i32_1 = arith.constant 0 : i32
    return %c0_i32, %c0_i32_0 : i32, i32
  }
  func.func @transform_3(%arg0: i32) -> (i32, i32) {
    %c0_i32 = arith.constant 0 : i32
    %c0_i32_0 = arith.constant 0 : i32
    %c0_i32_1 = arith.constant 0 : i32
    return %c0_i32, %c0_i32_0 : i32, i32
  }
  func.func @transform_4(%arg0: i32) -> (i32, i32) {
    %c0_i32 = arith.constant 0 : i32
    %c0_i32_0 = arith.constant 0 : i32
    %c0_i32_1 = arith.constant 0 : i32
    return %c0_i32, %c0_i32_0 : i32, i32
  }
  func.func @transform_5(%arg0: i32) -> (i32, i32) {
    %c0_i32 = arith.constant 0 : i32
    %c0_i32_0 = arith.constant 0 : i32
    %c0_i32_1 = arith.constant 0 : i32
    return %c0_i32, %c0_i32_0 : i32, i32
  }
  func.func @transform_6(%arg0: i32) -> i32 {
    %c0_i32 = arith.constant 0 : i32
    %c0_i32_0 = arith.constant 0 : i32
    return %c0_i32 : i32
  }
  func.func @transform_7(%arg0: i32) -> (i32, i32) {
    %c0_i32 = arith.constant 0 : i32
    %c0_i32_0 = arith.constant 0 : i32
    return %c0_i32, %arg0 : i32, i32
  }
}

module attributes {stable_mosaic.version = 11 : i64} {
  func.func @_disc_kernel(%arg0: i32, %arg1: memref<128x128xbf16, #tpu.memory_space<vmem>>, %arg2: memref<128x128xbf16, #tpu.memory_space<vmem>>, %arg3: memref<1x128xf32, #tpu.memory_space<vmem>>, %arg4: memref<128x128xbf16, #tpu.memory_space<vmem>>, %arg5: memref<1x128xf32, #tpu.memory_space<vmem>>, %arg6: memref<8x128xbf16, #tpu.memory_space<vmem>>, %arg7: memref<1xf32, #tpu.memory_space<smem>>, %arg8: memref<8x128xf32, #tpu.memory_space<vmem>>) attributes {dimension_semantics = [#tpu.dimension_semantics<parallel>], iteration_bounds = array<i64: 1>, scalar_prefetch = 0 : i64, scratch_operands = 0 : i64, tpu.core_type = #tpu.core_type<tc>, window_params = [{transform_indices = @transform_0, window_bounds = array<i64: 128, 128>}, {pipeline_mode = #tpu.pipeline_mode<synchronous>, transform_indices = @transform_1, window_bounds = array<i64: 128, 128>}, {pipeline_mode = #tpu.pipeline_mode<synchronous>, transform_indices = @transform_2, window_bounds = array<i64: 1, 128>}, {pipeline_mode = #tpu.pipeline_mode<synchronous>, transform_indices = @transform_3, window_bounds = array<i64: 128, 128>}, {pipeline_mode = #tpu.pipeline_mode<synchronous>, transform_indices = @transform_4, window_bounds = array<i64: 1, 128>}, {pipeline_mode = #tpu.pipeline_mode<synchronous>, transform_indices = @transform_5, window_bounds = array<i64: 8, 128>}, {transform_indices = @transform_6, window_bounds = array<i64: 1>}, {transform_indices = @transform_7, window_bounds = array<i64: 8, 128>}]} {
    %c0 = arith.constant 0 : index
    %c0_0 = arith.constant 0 : index
    %0 = vector.load %arg1[%c0, %c0_0] : memref<128x128xbf16, #tpu.memory_space<vmem>>, vector<128x128xbf16>
    %c0_1 = arith.constant 0 : index
    %c0_2 = arith.constant 0 : index
    %1 = vector.load %arg2[%c0_1, %c0_2] : memref<128x128xbf16, #tpu.memory_space<vmem>>, vector<128x128xbf16>
    %cst = arith.constant dense<0.000000e+00> : vector<128x128xf32>
    %2 = tpu.matmul %0, %1, %cst {dimension_numbers = #tpu.dot_dimension_numbers<[1], [0], [0], [1], [0, 0, 1, 1], [], []>} : vector<128x128xbf16>, vector<128x128xbf16>, vector<128x128xf32> -> vector<128x128xf32>
    %c0_3 = arith.constant 0 : index
    %c0_4 = arith.constant 0 : index
    %3 = vector.load %arg3[%c0_3, %c0_4] : memref<1x128xf32, #tpu.memory_space<vmem>>, vector<1x128xf32>
    %4 = vector.broadcast %3 : vector<1x128xf32> to vector<128x128xf32>
    %5 = arith.addf %2, %4 : vector<128x128xf32>
    %cst_5 = arith.constant 2.000000e-01 : f32
    %6 = vector.broadcast %cst_5 : f32 to vector<128x128xf32>
    %7 = arith.mulf %6, %5 : vector<128x128xf32>
    %8 = arith.maximumf %5, %7 : vector<128x128xf32>
    %9 = arith.truncf %8 : vector<128x128xf32> to vector<128x128xbf16>
    %c0_6 = arith.constant 0 : index
    %c0_7 = arith.constant 0 : index
    %10 = vector.load %arg4[%c0_6, %c0_7] : memref<128x128xbf16, #tpu.memory_space<vmem>>, vector<128x128xbf16>
    %cst_8 = arith.constant dense<0.000000e+00> : vector<128x128xf32>
    %11 = tpu.matmul %9, %10, %cst_8 {dimension_numbers = #tpu.dot_dimension_numbers<[1], [0], [0], [1], [0, 0, 1, 1], [], []>} : vector<128x128xbf16>, vector<128x128xbf16>, vector<128x128xf32> -> vector<128x128xf32>
    %c0_9 = arith.constant 0 : index
    %c0_10 = arith.constant 0 : index
    %12 = vector.load %arg5[%c0_9, %c0_10] : memref<1x128xf32, #tpu.memory_space<vmem>>, vector<1x128xf32>
    %13 = vector.broadcast %12 : vector<1x128xf32> to vector<128x128xf32>
    %14 = arith.addf %11, %13 : vector<128x128xf32>
    %cst_11 = arith.constant 2.000000e-01 : f32
    %15 = vector.broadcast %cst_11 : f32 to vector<128x128xf32>
    %16 = arith.mulf %15, %14 : vector<128x128xf32>
    %17 = arith.maximumf %14, %16 : vector<128x128xf32>
    %c0_12 = arith.constant 0 : index
    %c0_13 = arith.constant 0 : index
    %18 = vector.load %arg6[%c0_12, %c0_13] : memref<8x128xbf16, #tpu.memory_space<vmem>>, vector<8x128xbf16>
    %19 = arith.truncf %17 : vector<128x128xf32> to vector<128x128xbf16>
    %cst_14 = arith.constant dense<0.000000e+00> : vector<8x128xf32>
    %20 = tpu.matmul %18, %19, %cst_14 {dimension_numbers = #tpu.dot_dimension_numbers<[1], [1], [0], [0], [0, 0, 1, 0], [], []>} : vector<8x128xbf16>, vector<128x128xbf16>, vector<8x128xf32> -> vector<8x128xf32>
    %c0_15 = arith.constant 0 : index
    %21 = memref.load %arg7[%c0_15] : memref<1xf32, #tpu.memory_space<smem>>
    %22 = vector.broadcast %21 : f32 to vector<8x128xf32>
    %23 = arith.addf %20, %22 : vector<8x128xf32>
    %24 = arith.negf %23 : vector<8x128xf32>
    %25 = math.exp %24 : vector<8x128xf32>
    %cst_16 = arith.constant 1.000000e+00 : f32
    %26 = vector.broadcast %cst_16 : f32 to vector<8x128xf32>
    %27 = arith.addf %26, %25 : vector<8x128xf32>
    %28 = arith.divf %26, %27 : vector<8x128xf32>
    %c0_17 = arith.constant 0 : index
    %c0_18 = arith.constant 0 : index
    %29 = vector.load %arg8[%c0_17, %c0_18] : memref<8x128xf32, #tpu.memory_space<vmem>>, vector<8x128xf32>
    tpu.vector_store %arg8[%c0_17, %c0_18], %28 {strides = array<i32>} : memref<8x128xf32, #tpu.memory_space<vmem>>, vector<8x128xf32>,
    return
  }
  func.func @transform_0(%arg0: i32) -> (i32, i32) {
    %c0_i32 = arith.constant 0 : i32
    %c0_i32_0 = arith.constant 0 : i32
    return %arg0, %c0_i32 : i32, i32
  }
  func.func @transform_1(%arg0: i32) -> (i32, i32) {
    %c0_i32 = arith.constant 0 : i32
    %c0_i32_0 = arith.constant 0 : i32
    %c0_i32_1 = arith.constant 0 : i32
    return %c0_i32, %c0_i32_0 : i32, i32
  }
  func.func @transform_2(%arg0: i32) -> (i32, i32) {
    %c0_i32 = arith.constant 0 : i32
    %c0_i32_0 = arith.constant 0 : i32
    %c0_i32_1 = arith.constant 0 : i32
    return %c0_i32, %c0_i32_0 : i32, i32
  }
  func.func @transform_3(%arg0: i32) -> (i32, i32) {
    %c0_i32 = arith.constant 0 : i32
    %c0_i32_0 = arith.constant 0 : i32
    %c0_i32_1 = arith.constant 0 : i32
    return %c0_i32, %c0_i32_0 : i32, i32
  }
  func.func @transform_4(%arg0: i32) -> (i32, i32) {
    %c0_i32 = arith.constant 0 : i32
    %c0_i32_0 = arith.constant 0 : i32
    %c0_i32_1 = arith.constant 0 : i32
    return %c0_i32, %c0_i32_0 : i32, i32
  }
  func.func @transform_5(%arg0: i32) -> (i32, i32) {
    %c0_i32 = arith.constant 0 : i32
    %c0_i32_0 = arith.constant 0 : i32
    %c0_i32_1 = arith.constant 0 : i32
    return %c0_i32, %c0_i32_0 : i32, i32
  }
  func.func @transform_6(%arg0: i32) -> i32 {
    %c0_i32 = arith.constant 0 : i32
    %c0_i32_0 = arith.constant 0 : i32
    return %c0_i32 : i32
  }
  func.func @transform_7(%arg0: i32) -> (i32, i32) {
    %c0_i32 = arith.constant 0 : i32
    %c0_i32_0 = arith.constant 0 : i32
    return %c0_i32, %arg0 : i32, i32
  }
}

</mosaic_0001>

<llo_original>
// kernel: tpu_custom_call.1
$region0: #{tpu_custom_call.1}
  #allocation0 [shape = 'u32[]', space=smem, size = 0x4, offset = 0x4, fixed_abs, tag = 'smem constant byte address 0x4 - core index']
  #allocation1 [shape = 'u32[144,128]{1,0:T(1,128)}', space=vmem, size = 0x12000, scoped, tag = 'internal scratch']
  #allocation2 [shape = 'f32[1]{0:T(128)S(6)}', space=smem, size = 0x200, scoped, tag = 'scoped memory for tpu_custom_call.1']
  %s0 = inlined_call_operand.hbm [shape: bf16[128,128], index: 0, kind: input, shape index: {}]
  %s1 = inlined_call_operand.hbm [shape: bf16[128,128], index: 1, kind: input, shape index: {}]
  %s2 = inlined_call_operand.vmem [shape: f32[1,128], index: 2, kind: input, shape index: {}]
  %s3 = inlined_call_operand.hbm [shape: bf16[128,128], index: 3, kind: input, shape index: {}]
  %s4 = inlined_call_operand.vmem [shape: f32[1,128], index: 4, kind: input, shape index: {}]
  %s5 = inlined_call_operand.vmem [shape: bf16[8,128], index: 5, kind: input, shape index: {}]
  %s6 = inlined_call_operand.<no memory space> [shape: f32[1], index: 6, kind: input, shape index: {}]
  %s7 = inlined_call_operand.hbm [shape: f32[8,128], index: 7, kind: output, shape index: {}]
  %s8 = sld [smem:[#allocation0]]
  $region50: #{tpu_custom_call.1} parent=0
    _
  %s10 = ssub.s32 1, %s8
  %s11 = scalar_select 0, %s10, %s8
  %12 = sst [smem:[#allocation2]] %s6
  $region1: #{tpu_custom_call.1} parent=0
    #allocation3 [shape = 'u8[32768]{0}', space=vmem, size = 0x8000, scoped, tag = 'input window, operand 0, single buffered']
    #allocation4 [shape = 's32[1]{0}', space=sflag, size = 0x4, scoped, tag = 'scoped memory for tpu_custom_call.1']
    #allocation5 [shape = 's32[1]{0}', space=sflag, size = 0x4, scoped, tag = 'scoped memory for tpu_custom_call.1']
    #allocation6 [shape = 'u8[32768]{0}', space=vmem, size = 0x8000, scoped, tag = 'input window, operand 1, single buffered']
    #allocation7 [shape = 's32[1]{0}', space=sflag, size = 0x4, scoped, tag = 'scoped memory for tpu_custom_call.1']
    #allocation8 [shape = 'u8[32768]{0}', space=vmem, size = 0x8000, scoped, tag = 'input window, operand 3, single buffered']
    #allocation9 [shape = 'u8[4096]{0}', space=vmem, size = 0x1000, scoped, tag = 'output window, operand 0, single buffered']
    %13 = vsyncpa [#allocation4], 0
    %14 = vsyncpa [#allocation7], 0
    %15 = vsyncpa [#allocation5], 0
    // Predicated region
    $region2: #{tpu_custom_call.1} parent=1 // pred_check
      _
    $region3: #{tpu_custom_call.1} parent=1 // pred_check_branch
      %17 = sbr.rel (0) target = $region5
    $region4: #{tpu_custom_call.1} parent=1 // pred_region
      %s19 = ssub.s32 1024, 1024
      %20 = vsyncadd [#allocation4], %s19
      %s21 = sshll.u32 [#allocation3], 4
      %s22 = int_to_ptr.vmem [resolvable:$true] %s21
      %27 = dma.hbm_to_vmem [thread:$0]  %s0, 1024, %s22, [#allocation4], 64, 64, 4
    $region5: #{tpu_custom_call.1} parent=1 // pred_fallthru
      _
    // Predicated region
    $region6: #{tpu_custom_call.1} parent=1 // pred_check
      _
    $region7: #{tpu_custom_call.1} parent=1 // pred_check_branch
      %29 = sbr.rel (0) target = $region9
    $region8: #{tpu_custom_call.1} parent=1 // pred_region
      %s31 = ssub.s32 1024, 1024
      %32 = vsyncadd [#allocation7], %s31
      %s33 = sshll.u32 [#allocation6], 4
      %s34 = int_to_ptr.vmem [resolvable:$true] %s33
      %39 = dma.hbm_to_vmem [thread:$0]  %s1, 1024, %s34, [#allocation7], 64, 64, 4
    $region9: #{tpu_custom_call.1} parent=1 // pred_fallthru
      _
    // Predicated region
    $region10: #{tpu_custom_call.1} parent=1 // pred_check
      _
    $region11: #{tpu_custom_call.1} parent=1 // pred_check_branch
      %41 = sbr.rel (0) target = $region13
    $region12: #{tpu_custom_call.1} parent=1 // pred_region
      _
    $region13: #{tpu_custom_call.1} parent=1 // pred_fallthru
      _
    // Predicated region
    $region14: #{tpu_custom_call.1} parent=1 // pred_check
      _
    $region15: #{tpu_custom_call.1} parent=1 // pred_check_branch
      %43 = sbr.rel (0) target = $region17
    $region16: #{tpu_custom_call.1} parent=1 // pred_region
      %s45 = ssub.s32 1024, 1024
      %46 = vsyncadd [#allocation7], %s45
      %s47 = sshll.u32 [#allocation8], 4
      %s48 = int_to_ptr.vmem [resolvable:$true] %s47
      %53 = dma.hbm_to_vmem [thread:$0]  %s3, 1024, %s48, [#allocation7], 64, 64, 4
    $region17: #{tpu_custom_call.1} parent=1 // pred_fallthru
      _
    // Predicated region
    $region18: #{tpu_custom_call.1} parent=1 // pred_check
      _
    $region19: #{tpu_custom_call.1} parent=1 // pred_check_branch
      %55 = sbr.rel (0) target = $region21
    $region20: #{tpu_custom_call.1} parent=1 // pred_region
      _
    $region21: #{tpu_custom_call.1} parent=1 // pred_fallthru
      _
    // Predicated region
    $region22: #{tpu_custom_call.1} parent=1 // pred_check
      _
    $region23: #{tpu_custom_call.1} parent=1 // pred_check_branch
      %57 = sbr.rel (0) target = $region25
    $region24: #{tpu_custom_call.1} parent=1 // pred_region
      _
    $region25: #{tpu_custom_call.1} parent=1 // pred_fallthru
      _
    // Predicated region
    $region26: #{tpu_custom_call.1} parent=1 // pred_check
      _
    $region27: #{tpu_custom_call.1} parent=1 // pred_check_branch
      %59 = sbr.rel (0) target = $region29
    $region28: #{tpu_custom_call.1} parent=1 // pred_region
      _
    $region29: #{tpu_custom_call.1} parent=1 // pred_fallthru
      _
    // Predicated region
    $region30: #{tpu_custom_call.1} parent=1 // pred_check
      _
    $region31: #{tpu_custom_call.1} parent=1 // pred_check_branch
      %61 = sbr.rel (0) target = $region33
    $region32: #{tpu_custom_call.1} parent=1 // pred_region
      %62 = dma.done [#allocation4], 1024
    $region33: #{tpu_custom_call.1} parent=1 // pred_fallthru
      _
    // Predicated region
    $region34: #{tpu_custom_call.1} parent=1 // pred_check
      _
    $region35: #{tpu_custom_call.1} parent=1 // pred_check_branch
      %64 = sbr.rel (0) target = $region37
    $region36: #{tpu_custom_call.1} parent=1 // pred_region
      %65 = dma.done [#allocation7], 1024
    $region37: #{tpu_custom_call.1} parent=1 // pred_fallthru
      _
    // Predicated region
    $region38: #{tpu_custom_call.1} parent=1 // pred_check
      _
    $region39: #{tpu_custom_call.1} parent=1 // pred_check_branch
      %67 = sbr.rel (0) target = $region41
    $region40: #{tpu_custom_call.1} parent=1 // pred_region
      %68 = dma.done [#allocation7], 1024
    $region41: #{tpu_custom_call.1} parent=1 // pred_fallthru
      _
    %v70 = vld [vmem:[#allocation3] sm:$0xf]
    %v71 = vld [vmem:[#allocation3 + $0x4] sm:$0xf]
    %v72 = vld [vmem:[#allocation3 + $0x8] sm:$0xf]
    %v73 = vld [vmem:[#allocation3 + $0xc] sm:$0xf]
    %v74 = vld [vmem:[#allocation3 + $0x10] sm:$0xf]
    %v75 = vld [vmem:[#allocation3 + $0x14] sm:$0xf]
    %v76 = vld [vmem:[#allocation3 + $0x18] sm:$0xf]
    %v77 = vld [vmem:[#allocation3 + $0x1c] sm:$0xf]
    %v78 = vld [vmem:[#allocation3 + $0x20] sm:$0xf]
    %v79 = vld [vmem:[#allocation3 + $0x24] sm:$0xf]
    %v80 = vld [vmem:[#allocation3 + $0x28] sm:$0xf]
    %v81 = vld [vmem:[#allocation3 + $0x2c] sm:$0xf]
    %v82 = vld [vmem:[#allocation3 + $0x30] sm:$0xf]
    %v83 = vld [vmem:[#allocation3 + $0x34] sm:$0xf]
    %v84 = vld [vmem:[#allocation3 + $0x38] sm:$0xf]
    %v85 = vld [vmem:[#allocation3 + $0x3c] sm:$0xf]
    %v86 = vld [vmem:[#allocation6] sm:$0xf]
    %v87 = vld [vmem:[#allocation6 + $0x4] sm:$0xf]
    %v88 = vld [vmem:[#allocation6 + $0x8] sm:$0xf]
    %v89 = vld [vmem:[#allocation6 + $0xc] sm:$0xf]
    %v90 = vld [vmem:[#allocation6 + $0x10] sm:$0xf]
    %v91 = vld [vmem:[#allocation6 + $0x14] sm:$0xf]
    %v92 = vld [vmem:[#allocation6 + $0x18] sm:$0xf]
    %v93 = vld [vmem:[#allocation6 + $0x1c] sm:$0xf]
    %v94 = vld [vmem:[#allocation6 + $0x20] sm:$0xf]
    %v95 = vld [vmem:[#allocation6 + $0x24] sm:$0xf]
    %v96 = vld [vmem:[#allocation6 + $0x28] sm:$0xf]
    %v97 = vld [vmem:[#allocation6 + $0x2c] sm:$0xf]
    %v98 = vld [vmem:[#allocation6 + $0x30] sm:$0xf]
    %v99 = vld [vmem:[#allocation6 + $0x34] sm:$0xf]
    %v100 = vld [vmem:[#allocation6 + $0x38] sm:$0xf]
    %v101 = vld [vmem:[#allocation6 + $0x3c] sm:$0xf]
    %v102 = vld [vmem:[%s2] sm:$0x1]
    %v104 = vlaneseq
    %v105 = vshrl.u32 %v104, 7
    %v106 = vsub.s32 0, %v105
    %v107 = vrot.slane %v102, %v106
    %v125 = vunpack.c.l.b16 %v70
    %v126 = vunpack.c.l.b16 %v71
    %v127 = vunpack.c.l.b16 %v72
    %v128 = vunpack.c.l.b16 %v73
    %v129 = vunpack.c.l.b16 %v74
    %v130 = vunpack.c.l.b16 %v75
    %v131 = vunpack.c.l.b16 %v76
    %v132 = vunpack.c.l.b16 %v77
    %v133 = vunpack.c.l.b16 %v78
    %v134 = vunpack.c.l.b16 %v79
    %v135 = vunpack.c.l.b16 %v80
    %v136 = vunpack.c.l.b16 %v81
    %v137 = vunpack.c.l.b16 %v82
    %v138 = vunpack.c.l.b16 %v83
    %v139 = vunpack.c.l.b16 %v84
    %v140 = vunpack.c.l.b16 %v85
    %v141 = vpack.c.b16 %v126, %v125
    %v142 = vpack.c.b16 %v128, %v127
    %v143 = vpack.c.b16 %v130, %v129
    %v144 = vpack.c.b16 %v132, %v131
    %v145 = vpack.c.b16 %v134, %v133
    %v146 = vpack.c.b16 %v136, %v135
    %v147 = vpack.c.b16 %v138, %v137
    %v148 = vpack.c.b16 %v140, %v139
    %v173 = vunpack.c.l.b16 %v86
    %v174 = vunpack.c.l.b16 %v87
    %v175 = vunpack.c.l.b16 %v88
    %v176 = vunpack.c.l.b16 %v89
    %v177 = vunpack.c.l.b16 %v90
    %v178 = vunpack.c.l.b16 %v91
    %v179 = vunpack.c.l.b16 %v92
    %v180 = vunpack.c.l.b16 %v93
    %v181 = vunpack.c.l.b16 %v94
    %v182 = vunpack.c.l.b16 %v95
    %v183 = vunpack.c.l.b16 %v96
    %v184 = vunpack.c.l.b16 %v97
    %v185 = vunpack.c.l.b16 %v98
    %v186 = vunpack.c.l.b16 %v99
    %v187 = vunpack.c.l.b16 %v100
    %v188 = vunpack.c.l.b16 %v101
    %v189 = vpack.c.b16 %v174, %v173
    %v190 = vpack.c.b16 %v176, %v175
    %v191 = vpack.c.b16 %v178, %v177
    %v192 = vpack.c.b16 %v180, %v179
    %v193 = vpack.c.b16 %v182, %v181
    %v194 = vpack.c.b16 %v184, %v183
    %v195 = vpack.c.b16 %v186, %v185
    %v196 = vpack.c.b16 %v188, %v187
    %205 = vmatprep.subr.bf16.mxu0 0
    %206 = vmatpush1.bf16.msra.mxu0 %v189
    %207 = vmatprep.subr.bf16.mxu0 0
    %208 = vmatpush1.bf16.msra.mxu0 %v190
    %209 = vmatprep.subr.bf16.mxu0 0
    %210 = vmatpush1.bf16.msra.mxu0 %v191
    %211 = vmatprep.subr.bf16.mxu0 0
    %212 = vmatpush1.bf16.msra.mxu0 %v192
    %213 = vmatprep.subr.bf16.mxu0 0
    %214 = vmatpush1.bf16.msra.mxu0 %v193
    %215 = vmatprep.subr.bf16.mxu0 0
    %216 = vmatpush1.bf16.msra.mxu0 %v194
    %217 = vmatprep.subr.bf16.mxu0 0
    %218 = vmatpush1.bf16.msra.mxu0 %v195
    %219 = vmatprep.subr.bf16.mxu0 0
    %220 = vmatpush1.bf16.msra.mxu0 %v196
    %221 = vmatprep.subr.bf16.mxu0 0
    %222 = vmatpush1.bf16.msra.mxu0 0
    %223 = vmatprep.subr.bf16.mxu0 0
    %224 = vmatpush1.bf16.msra.mxu0 0
    %225 = vmatprep.subr.bf16.mxu0 0
    %226 = vmatpush1.bf16.msra.mxu0 0
    %227 = vmatprep.subr.bf16.mxu0 0
    %228 = vmatpush1.bf16.msra.mxu0 0
    %229 = vmatprep.subr.bf16.mxu0 0
    %230 = vmatpush1.bf16.msra.mxu0 0
    %231 = vmatprep.subr.bf16.mxu0 0
    %232 = vmatpush1.bf16.msra.mxu0 0
    %233 = vmatprep.subr.bf16.mxu0 0
    %234 = vmatpush1.bf16.msra.mxu0 0
    %235 = vmatprep.subr.bf16.mxu0 0
    %236 = vmatpush1.bf16.msra.mxu0 0
    %237 = vmatprep.mubr.bf16.mxu0 0
    %238 = vmatmul.mubr.bf16.gmra.mrb[0].mxu0 %v141
    %v239 = vpop.f32.mrb[0].mxu0
    %v240 = vadd.f32 %v107, %v239
    %v241 = vpop.f32.mrb[0].mxu0
    %v242 = vpop.f32.mrb[0].mxu0
    %v243 = vadd.f32 %v107, %v242
    %v244 = vpop.f32.mrb[0].mxu0
    %245 = vmatprep.mubr.bf16.mxu0 0
    %246 = vmatmul.mubr.bf16.gmra.mrb[0].mxu0 %v142
    %v247 = vpop.f32.mrb[0].mxu0
    %v248 = vadd.f32 %v107, %v247
    %v249 = vpop.f32.mrb[0].mxu0
    %v250 = vpop.f32.mrb[0].mxu0
    %v251 = vadd.f32 %v107, %v250
    %v252 = vpop.f32.mrb[0].mxu0
    %253 = vmatprep.mubr.bf16.mxu0 0
    %254 = vmatmul.mubr.bf16.gmra.mrb[0].mxu0 %v143
    %v255 = vpop.f32.mrb[0].mxu0
    %v256 = vadd.f32 %v107, %v255
    %v257 = vpop.f32.mrb[0].mxu0
    %v258 = vpop.f32.mrb[0].mxu0
    %v259 = vadd.f32 %v107, %v258
    %v260 = vpop.f32.mrb[0].mxu0
    %261 = vmatprep.mubr.bf16.mxu0 0
    %262 = vmatmul.mubr.bf16.gmra.mrb[0].mxu0 %v144
    %v263 = vpop.f32.mrb[0].mxu0
    %v264 = vadd.f32 %v107, %v263
    %v265 = vpop.f32.mrb[0].mxu0
    %v266 = vpop.f32.mrb[0].mxu0
    %v267 = vadd.f32 %v107, %v266
    %v268 = vpop.f32.mrb[0].mxu0
    %269 = vmatprep.mubr.bf16.mxu0 0
    %270 = vmatmul.mubr.bf16.gmra.mrb[0].mxu0 %v145
    %v271 = vpop.f32.mrb[0].mxu0
    %v272 = vadd.f32 %v107, %v271
    %v273 = vpop.f32.mrb[0].mxu0
    %v274 = vpop.f32.mrb[0].mxu0
    %v275 = vadd.f32 %v107, %v274
    %v276 = vpop.f32.mrb[0].mxu0
    %277 = vmatprep.mubr.bf16.mxu0 0
    %278 = vmatmul.mubr.bf16.gmra.mrb[0].mxu0 %v146
    %v279 = vpop.f32.mrb[0].mxu0
    %v280 = vadd.f32 %v107, %v279
    %v281 = vpop.f32.mrb[0].mxu0
    %v282 = vpop.f32.mrb[0].mxu0
    %v283 = vadd.f32 %v107, %v282
    %v284 = vpop.f32.mrb[0].mxu0
    %285 = vmatprep.mubr.bf16.mxu0 0
    %286 = vmatmul.mubr.bf16.gmra.mrb[0].mxu0 %v147
    %v287 = vpop.f32.mrb[0].mxu0
    %v288 = vadd.f32 %v107, %v287
    %v289 = vpop.f32.mrb[0].mxu0
    %v290 = vpop.f32.mrb[0].mxu0
    %v291 = vadd.f32 %v107, %v290
    %v292 = vpop.f32.mrb[0].mxu0
    %293 = vmatprep.mubr.bf16.mxu0 0
    %294 = vmatmul.mubr.bf16.gmra.mrb[0].mxu0 %v148
    %v295 = vpop.f32.mrb[0].mxu0
    %v296 = vadd.f32 %v107, %v295
    %v297 = vpop.f32.mrb[0].mxu0
    %v298 = vpop.f32.mrb[0].mxu0
    %v299 = vadd.f32 %v107, %v298
    %v300 = vpop.f32.mrb[0].mxu0
    %301 = vdwg.mxu0
    %v302 = vmul.f32 %v240, 0.2
    %v303 = vmul.f32 %v243, 0.2
    %v304 = vmul.f32 %v248, 0.2
    %v305 = vmul.f32 %v251, 0.2
    %v306 = vmul.f32 %v256, 0.2
    %v307 = vmul.f32 %v259, 0.2
    %v308 = vmul.f32 %v264, 0.2
    %v309 = vmul.f32 %v267, 0.2
    %v310 = vmul.f32 %v272, 0.2
    %v311 = vmul.f32 %v275, 0.2
    %v312 = vmul.f32 %v280, 0.2
    %v313 = vmul.f32 %v283, 0.2
    %v314 = vmul.f32 %v288, 0.2
    %v315 = vmul.f32 %v291, 0.2
    %v316 = vmul.f32 %v296, 0.2
    %v317 = vmul.f32 %v299, 0.2
    %v318 = vmax.f32 %v240, %v302
    %v319 = vmax.f32 %v243, %v303
    %v320 = vmax.f32 %v248, %v304
    %v321 = vmax.f32 %v251, %v305
    %v322 = vmax.f32 %v256, %v306
    %v323 = vmax.f32 %v259, %v307
    %v324 = vmax.f32 %v264, %v308
    %v325 = vmax.f32 %v267, %v309
    %v326 = vmax.f32 %v272, %v310
    %v327 = vmax.f32 %v275, %v311
    %v328 = vmax.f32 %v280, %v312
    %v329 = vmax.f32 %v283, %v313
    %v330 = vmax.f32 %v288, %v314
    %v331 = vmax.f32 %v291, %v315
    %v332 = vmax.f32 %v296, %v316
    %v333 = vmax.f32 %v299, %v317
    %v334 = vpack.c.bf16 %v319, %v318
    %v335 = vpack.c.bf16 %v321, %v320
    %v336 = vpack.c.bf16 %v323, %v322
    %v337 = vpack.c.bf16 %v325, %v324
    %v338 = vpack.c.bf16 %v327, %v326
    %v339 = vpack.c.bf16 %v329, %v328
    %v340 = vpack.c.bf16 %v331, %v330
    %v341 = vpack.c.bf16 %v333, %v332
    %v342 = vld [vmem:[#allocation8] sm:$0xf]
    %v343 = vld [vmem:[#allocation8 + $0x4] sm:$0xf]
    %v344 = vld [vmem:[#allocation8 + $0x8] sm:$0xf]
    %v345 = vld [vmem:[#allocation8 + $0xc] sm:$0xf]
    %v346 = vld [vmem:[#allocation8 + $0x10] sm:$0xf]
    %v347 = vld [vmem:[#allocation8 + $0x14] sm:$0xf]
    %v348 = vld [vmem:[#allocation8 + $0x18] sm:$0xf]
    %v349 = vld [vmem:[#allocation8 + $0x1c] sm:$0xf]
    %v350 = vld [vmem:[#allocation8 + $0x20] sm:$0xf]
    %v351 = vld [vmem:[#allocation8 + $0x24] sm:$0xf]
    %v352 = vld [vmem:[#allocation8 + $0x28] sm:$0xf]
    %v353 = vld [vmem:[#allocation8 + $0x2c] sm:$0xf]
    %v354 = vld [vmem:[#allocation8 + $0x30] sm:$0xf]
    %v355 = vld [vmem:[#allocation8 + $0x34] sm:$0xf]
    %v356 = vld [vmem:[#allocation8 + $0x38] sm:$0xf]
    %v357 = vld [vmem:[#allocation8 + $0x3c] sm:$0xf]
    %v358 = vld [vmem:[%s4] sm:$0x1]
    %v360 = vlaneseq
    %v361 = vshrl.u32 %v360, 7
    %v362 = vsub.s32 0, %v361
    %v363 = vrot.slane %v358, %v362
    %v381 = vunpack.c.l.b16 %v342
    %v382 = vunpack.c.l.b16 %v343
    %v383 = vunpack.c.l.b16 %v344
    %v384 = vunpack.c.l.b16 %v345
    %v385 = vunpack.c.l.b16 %v346
    %v386 = vunpack.c.l.b16 %v347
    %v387 = vunpack.c.l.b16 %v348
    %v388 = vunpack.c.l.b16 %v349
    %v389 = vunpack.c.l.b16 %v350
    %v390 = vunpack.c.l.b16 %v351
    %v391 = vunpack.c.l.b16 %v352
    %v392 = vunpack.c.l.b16 %v353
    %v393 = vunpack.c.l.b16 %v354
    %v394 = vunpack.c.l.b16 %v355
    %v395 = vunpack.c.l.b16 %v356
    %v396 = vunpack.c.l.b16 %v357
    %v397 = vpack.c.b16 %v382, %v381
    %v398 = vpack.c.b16 %v384, %v383
    %v399 = vpack.c.b16 %v386, %v385
    %v400 = vpack.c.b16 %v388, %v387
    %v401 = vpack.c.b16 %v390, %v389
    %v402 = vpack.c.b16 %v392, %v391
    %v403 = vpack.c.b16 %v394, %v393
    %v404 = vpack.c.b16 %v396, %v395
    %413 = vmatprep.subr.bf16.mxu0 0
    %414 = vmatpush1.bf16.msra.mxu0 %v397
    %415 = vmatprep.subr.bf16.mxu0 0
    %416 = vmatpush1.bf16.msra.mxu0 %v398
    %417 = vmatprep.subr.bf16.mxu0 0
    %418 = vmatpush1.bf16.msra.mxu0 %v399
    %419 = vmatprep.subr.bf16.mxu0 0
    %420 = vmatpush1.bf16.msra.mxu0 %v400
    %421 = vmatprep.subr.bf16.mxu0 0
    %422 = vmatpush1.bf16.msra.mxu0 %v401
    %423 = vmatprep.subr.bf16.mxu0 0
    %424 = vmatpush1.bf16.msra.mxu0 %v402
    %425 = vmatprep.subr.bf16.mxu0 0
    %426 = vmatpush1.bf16.msra.mxu0 %v403
    %427 = vmatprep.subr.bf16.mxu0 0
    %428 = vmatpush1.bf16.msra.mxu0 %v404
    %429 = vmatprep.subr.bf16.mxu0 0
    %430 = vmatpush1.bf16.msra.mxu0 0
    %431 = vmatprep.subr.bf16.mxu0 0
    %432 = vmatpush1.bf16.msra.mxu0 0
    %433 = vmatprep.subr.bf16.mxu0 0
    %434 = vmatpush1.bf16.msra.mxu0 0
    %435 = vmatprep.subr.bf16.mxu0 0
    %436 = vmatpush1.bf16.msra.mxu0 0
    %437 = vmatprep.subr.bf16.mxu0 0
    %438 = vmatpush1.bf16.msra.mxu0 0
    %439 = vmatprep.subr.bf16.mxu0 0
    %440 = vmatpush1.bf16.msra.mxu0 0
    %441 = vmatprep.subr.bf16.mxu0 0
    %442 = vmatpush1.bf16.msra.mxu0 0
    %443 = vmatprep.subr.bf16.mxu0 0
    %444 = vmatpush1.bf16.msra.mxu0 0
    %445 = vmatprep.mubr.bf16.mxu0 0
    %446 = vmatmul.mubr.bf16.gmra.mrb[0].mxu0 %v334
    %v447 = vpop.f32.mrb[0].mxu0
    %v448 = vadd.f32 %v363, %v447
    %v449 = vpop.f32.mrb[0].mxu0
    %v450 = vpop.f32.mrb[0].mxu0
    %v451 = vadd.f32 %v363, %v450
    %v452 = vpop.f32.mrb[0].mxu0
    %453 = vmatprep.mubr.bf16.mxu0 0
    %454 = vmatmul.mubr.bf16.gmra.mrb[0].mxu0 %v335
    %v455 = vpop.f32.mrb[0].mxu0
    %v456 = vadd.f32 %v363, %v455
    %v457 = vpop.f32.mrb[0].mxu0
    %v458 = vpop.f32.mrb[0].mxu0
    %v459 = vadd.f32 %v363, %v458
    %v460 = vpop.f32.mrb[0].mxu0
    %461 = vmatprep.mubr.bf16.mxu0 0
    %462 = vmatmul.mubr.bf16.gmra.mrb[0].mxu0 %v336
    %v463 = vpop.f32.mrb[0].mxu0
    %v464 = vadd.f32 %v363, %v463
    %v465 = vpop.f32.mrb[0].mxu0
    %v466 = vpop.f32.mrb[0].mxu0
    %v467 = vadd.f32 %v363, %v466
    %v468 = vpop.f32.mrb[0].mxu0
    %469 = vmatprep.mubr.bf16.mxu0 0
    %470 = vmatmul.mubr.bf16.gmra.mrb[0].mxu0 %v337
    %v471 = vpop.f32.mrb[0].mxu0
    %v472 = vadd.f32 %v363, %v471
    %v473 = vpop.f32.mrb[0].mxu0
    %v474 = vpop.f32.mrb[0].mxu0
    %v475 = vadd.f32 %v363, %v474
    %v476 = vpop.f32.mrb[0].mxu0
    %477 = vmatprep.mubr.bf16.mxu0 0
    %478 = vmatmul.mubr.bf16.gmra.mrb[0].mxu0 %v338
    %v479 = vpop.f32.mrb[0].mxu0
    %v480 = vadd.f32 %v363, %v479
    %v481 = vpop.f32.mrb[0].mxu0
    %v482 = vpop.f32.mrb[0].mxu0
    %v483 = vadd.f32 %v363, %v482
    %v484 = vpop.f32.mrb[0].mxu0
    %485 = vmatprep.mubr.bf16.mxu0 0
    %486 = vmatmul.mubr.bf16.gmra.mrb[0].mxu0 %v339
    %v487 = vpop.f32.mrb[0].mxu0
    %v488 = vadd.f32 %v363, %v487
    %v489 = vpop.f32.mrb[0].mxu0
    %v490 = vpop.f32.mrb[0].mxu0
    %v491 = vadd.f32 %v363, %v490
    %v492 = vpop.f32.mrb[0].mxu0
    %493 = vmatprep.mubr.bf16.mxu0 0
    %494 = vmatmul.mubr.bf16.gmra.mrb[0].mxu0 %v340
    %v495 = vpop.f32.mrb[0].mxu0
    %v496 = vadd.f32 %v363, %v495
    %v497 = vpop.f32.mrb[0].mxu0
    %v498 = vpop.f32.mrb[0].mxu0
    %v499 = vadd.f32 %v363, %v498
    %v500 = vpop.f32.mrb[0].mxu0
    %501 = vmatprep.mubr.bf16.mxu0 0
    %502 = vmatmul.mubr.bf16.gmra.mrb[0].mxu0 %v341
    %v503 = vpop.f32.mrb[0].mxu0
    %v504 = vadd.f32 %v363, %v503
    %v505 = vpop.f32.mrb[0].mxu0
    %v506 = vpop.f32.mrb[0].mxu0
    %v507 = vadd.f32 %v363, %v506
    %v508 = vpop.f32.mrb[0].mxu0
    %509 = vdwg.mxu0
    %v510 = vmul.f32 %v448, 0.2
    %v511 = vmul.f32 %v451, 0.2
    %v512 = vmul.f32 %v456, 0.2
    %v513 = vmul.f32 %v459, 0.2
    %v514 = vmul.f32 %v464, 0.2
    %v515 = vmul.f32 %v467, 0.2
    %v516 = vmul.f32 %v472, 0.2
    %v517 = vmul.f32 %v475, 0.2
    %v518 = vmul.f32 %v480, 0.2
    %v519 = vmul.f32 %v483, 0.2
    %v520 = vmul.f32 %v488, 0.2
    %v521 = vmul.f32 %v491, 0.2
    %v522 = vmul.f32 %v496, 0.2
    %v523 = vmul.f32 %v499, 0.2
    %v524 = vmul.f32 %v504, 0.2
    %v525 = vmul.f32 %v507, 0.2
    %v526 = vmax.f32 %v448, %v510
    %v527 = vmax.f32 %v451, %v511
    %v528 = vmax.f32 %v456, %v512
    %v529 = vmax.f32 %v459, %v513
    %v530 = vmax.f32 %v464, %v514
    %v531 = vmax.f32 %v467, %v515
    %v532 = vmax.f32 %v472, %v516
    %v533 = vmax.f32 %v475, %v517
    %v534 = vmax.f32 %v480, %v518
    %v535 = vmax.f32 %v483, %v519
    %v536 = vmax.f32 %v488, %v520
    %v537 = vmax.f32 %v491, %v521
    %v538 = vmax.f32 %v496, %v522
    %v539 = vmax.f32 %v499, %v523
    %v540 = vmax.f32 %v504, %v524
    %v541 = vmax.f32 %v507, %v525
    %v542 = vld [vmem:[%s5] sm:$0xf]
    %v543 = vpack.c.bf16 %v527, %v526
    %v544 = vpack.c.bf16 %v529, %v528
    %v545 = vpack.c.bf16 %v531, %v530
    %v546 = vpack.c.bf16 %v533, %v532
    %v547 = vpack.c.bf16 %v535, %v534
    %v548 = vpack.c.bf16 %v537, %v536
    %v549 = vpack.c.bf16 %v539, %v538
    %v550 = vpack.c.bf16 %v541, %v540
    %s551 = sld [smem:[#allocation2]]
    %v552 = vstv %s551
    %553 = vmatprep.subr.bf16.mxu0 0
    %554 = vmatpush1.bf16.xpose.msra.mxu0 %v543
    %555 = vmatprep.subr.bf16.mxu0 0
    %556 = vmatpush1.bf16.xpose.msra.mxu0 %v544
    %557 = vmatprep.subr.bf16.mxu0 0
    %558 = vmatpush1.bf16.xpose.msra.mxu0 %v545
    %559 = vmatprep.subr.bf16.mxu0 0
    %560 = vmatpush1.bf16.xpose.msra.mxu0 %v546
    %561 = vmatprep.subr.bf16.mxu0 0
    %562 = vmatpush1.bf16.xpose.msra.mxu0 %v547
    %563 = vmatprep.subr.bf16.mxu0 0
    %564 = vmatpush1.bf16.xpose.msra.mxu0 %v548
    %565 = vmatprep.subr.bf16.mxu0 0
    %566 = vmatpush1.bf16.xpose.msra.mxu0 %v549
    %567 = vmatprep.subr.bf16.mxu0 0
    %568 = vmatpush1.bf16.xpose.msra.mxu0 %v550
    %569 = vmatprep.subr.bf16.mxu0 0
    %570 = vmatpush1.bf16.xpose.msra.mxu0 0
    %571 = vmatprep.subr.bf16.mxu0 0
    %572 = vmatpush1.bf16.xpose.msra.mxu0 0
    %573 = vmatprep.subr.bf16.mxu0 0
    %574 = vmatpush1.bf16.xpose.msra.mxu0 0
    %575 = vmatprep.subr.bf16.mxu0 0
    %576 = vmatpush1.bf16.xpose.msra.mxu0 0
    %577 = vmatprep.subr.bf16.mxu0 0
    %578 = vmatpush1.bf16.xpose.msra.mxu0 0
    %579 = vmatprep.subr.bf16.mxu0 0
    %580 = vmatpush1.bf16.xpose.msra.mxu0 0
    %581 = vmatprep.subr.bf16.mxu0 0
    %582 = vmatpush1.bf16.xpose.msra.mxu0 0
    %583 = vmatprep.subr.bf16.mxu0 0
    %584 = vmatpush1.bf16.xpose.msra.mxu0 0
    %585 = vmatprep.mubr.bf16.mxu0 0
    %586 = vmatmul.mubr.bf16.gmra.mrb[0].mxu0 %v542
    %v587 = vpop.f32.mrb[0].mxu0
    %v588 = vadd.f32 %v552, %v587
    %v589 = vpop.f32.mrb[0].mxu0
    %v590 = vpop.f32.mrb[0].mxu0
    %v591 = vpop.f32.mrb[0].mxu0
    %592 = vdwg.mxu0
    %v593 = vxor.u32 %v588, 2147483648
    %v594 = vmul.f32 %v593, 1.442695
    %v595 = vpow.pop %v594
    %v596 = vadd.f32 %v595, 1.0
    %v597 = vrcp.pop %v596
    %v598 = vmul.f32 1.0, %v597
    %599 = vst [vmem:[#allocation9] sm:$0xff] %v598
    // Predicated region
    $region42: #{tpu_custom_call.1} parent=1 // pred_check
      _
    $region43: #{tpu_custom_call.1} parent=1 // pred_check_branch
      %601 = sbr.rel (0) target = $region45
    $region44: #{tpu_custom_call.1} parent=1 // pred_region
      %s603 = ssub.s32 128, 128
      %604 = vsyncadd [#allocation5], %s603
      %s606 = sshll.u32 [#allocation9], 4
      %s607 = int_to_ptr.vmem [resolvable:$true] %s606
      %609 = dma.vmem_to_hbm [thread:$0]  %s607, 128, %s7, [#allocation5]
    $region45: #{tpu_custom_call.1} parent=1 // pred_fallthru
      _
    // Predicated region
    $region46: #{tpu_custom_call.1} parent=1 // pred_check
      _
    $region47: #{tpu_custom_call.1} parent=1 // pred_check_branch
      %611 = sbr.rel (0) target = $region49
    $region48: #{tpu_custom_call.1} parent=1 // pred_region
      %612 = dma.done [#allocation5], 128
    $region49: #{tpu_custom_call.1} parent=1 // pred_fallthru
      _
    %613 = vsyncpa [#allocation4], 1
    %614 = vsyncpa [#allocation7], 1
    %615 = vsyncpa [#allocation5], 1

// kernel: tpu_custom_call.1
$region0: #{tpu_custom_call.1}
  #allocation0 [shape = 'u32[]', space=smem, size = 0x4, offset = 0x4, fixed_abs, tag = 'smem constant byte address 0x4 - core index']
  #allocation1 [shape = 'u32[144,128]{1,0:T(1,128)}', space=vmem, size = 0x12000, scoped, tag = 'internal scratch']
  #allocation2 [shape = 'f32[1]{0:T(128)S(6)}', space=smem, size = 0x200, scoped, tag = 'scoped memory for tpu_custom_call.1']
  %s0 = inlined_call_operand.hbm [shape: bf16[128,128], index: 0, kind: input, shape index: {}]
  %s1 = inlined_call_operand.hbm [shape: bf16[128,128], index: 1, kind: input, shape index: {}]
  %s2 = inlined_call_operand.vmem [shape: f32[1,128], index: 2, kind: input, shape index: {}]
  %s3 = inlined_call_operand.hbm [shape: bf16[128,128], index: 3, kind: input, shape index: {}]
  %s4 = inlined_call_operand.vmem [shape: f32[1,128], index: 4, kind: input, shape index: {}]
  %s5 = inlined_call_operand.vmem [shape: bf16[8,128], index: 5, kind: input, shape index: {}]
  %s6 = inlined_call_operand.<no memory space> [shape: f32[1], index: 6, kind: input, shape index: {}]
  %s7 = inlined_call_operand.hbm [shape: f32[8,128], index: 7, kind: output, shape index: {}]
  %s8 = sld [smem:[#allocation0]]
  $region50: #{tpu_custom_call.1} parent=0
    _
  %s10 = ssub.s32 1, %s8
  %s11 = scalar_select 0, %s10, %s8
  %12 = sst [smem:[#allocation2]] %s6
  $region1: #{tpu_custom_call.1} parent=0
    #allocation3 [shape = 'u8[32768]{0}', space=vmem, size = 0x8000, scoped, tag = 'input window, operand 0, single buffered']
    #allocation4 [shape = 's32[1]{0}', space=sflag, size = 0x4, scoped, tag = 'scoped memory for tpu_custom_call.1']
    #allocation5 [shape = 's32[1]{0}', space=sflag, size = 0x4, scoped, tag = 'scoped memory for tpu_custom_call.1']
    #allocation6 [shape = 'u8[32768]{0}', space=vmem, size = 0x8000, scoped, tag = 'input window, operand 1, single buffered']
    #allocation7 [shape = 's32[1]{0}', space=sflag, size = 0x4, scoped, tag = 'scoped memory for tpu_custom_call.1']
    #allocation8 [shape = 'u8[32768]{0}', space=vmem, size = 0x8000, scoped, tag = 'input window, operand 3, single buffered']
    #allocation9 [shape = 'u8[4096]{0}', space=vmem, size = 0x1000, scoped, tag = 'output window, operand 0, single buffered']
    %13 = vsyncpa [#allocation4], 0
    %14 = vsyncpa [#allocation7], 0
    %15 = vsyncpa [#allocation5], 0
    // Predicated region
    $region2: #{tpu_custom_call.1} parent=1 // pred_check
      _
    $region3: #{tpu_custom_call.1} parent=1 // pred_check_branch
      %17 = sbr.rel (0) target = $region5
    $region4: #{tpu_custom_call.1} parent=1 // pred_region
      %s19 = ssub.s32 1024, 1024
      %20 = vsyncadd [#allocation4], %s19
      %s21 = sshll.u32 [#allocation3], 4
      %s22 = int_to_ptr.vmem [resolvable:$true] %s21
      %27 = dma.hbm_to_vmem [thread:$0]  %s0, 1024, %s22, [#allocation4], 64, 64, 4
    $region5: #{tpu_custom_call.1} parent=1 // pred_fallthru
      _
    // Predicated region
    $region6: #{tpu_custom_call.1} parent=1 // pred_check
      _
    $region7: #{tpu_custom_call.1} parent=1 // pred_check_branch
      %29 = sbr.rel (0) target = $region9
    $region8: #{tpu_custom_call.1} parent=1 // pred_region
      %s31 = ssub.s32 1024, 1024
      %32 = vsyncadd [#allocation7], %s31
      %s33 = sshll.u32 [#allocation6], 4
      %s34 = int_to_ptr.vmem [resolvable:$true] %s33
      %39 = dma.hbm_to_vmem [thread:$0]  %s1, 1024, %s34, [#allocation7], 64, 64, 4
    $region9: #{tpu_custom_call.1} parent=1 // pred_fallthru
      _
    // Predicated region
    $region10: #{tpu_custom_call.1} parent=1 // pred_check
      _
    $region11: #{tpu_custom_call.1} parent=1 // pred_check_branch
      %41 = sbr.rel (0) target = $region13
    $region12: #{tpu_custom_call.1} parent=1 // pred_region
      _
    $region13: #{tpu_custom_call.1} parent=1 // pred_fallthru
      _
    // Predicated region
    $region14: #{tpu_custom_call.1} parent=1 // pred_check
      _
    $region15: #{tpu_custom_call.1} parent=1 // pred_check_branch
      %43 = sbr.rel (0) target = $region17
    $region16: #{tpu_custom_call.1} parent=1 // pred_region
      %s45 = ssub.s32 1024, 1024
      %46 = vsyncadd [#allocation7], %s45
      %s47 = sshll.u32 [#allocation8], 4
      %s48 = int_to_ptr.vmem [resolvable:$true] %s47
      %53 = dma.hbm_to_vmem [thread:$0]  %s3, 1024, %s48, [#allocation7], 64, 64, 4
    $region17: #{tpu_custom_call.1} parent=1 // pred_fallthru
      _
    // Predicated region
    $region18: #{tpu_custom_call.1} parent=1 // pred_check
      _
    $region19: #{tpu_custom_call.1} parent=1 // pred_check_branch
      %55 = sbr.rel (0) target = $region21
    $region20: #{tpu_custom_call.1} parent=1 // pred_region
      _
    $region21: #{tpu_custom_call.1} parent=1 // pred_fallthru
      _
    // Predicated region
    $region22: #{tpu_custom_call.1} parent=1 // pred_check
      _
    $region23: #{tpu_custom_call.1} parent=1 // pred_check_branch
      %57 = sbr.rel (0) target = $region25
    $region24: #{tpu_custom_call.1} parent=1 // pred_region
      _
    $region25: #{tpu_custom_call.1} parent=1 // pred_fallthru
      _
    // Predicated region
    $region26: #{tpu_custom_call.1} parent=1 // pred_check
      _
    $region27: #{tpu_custom_call.1} parent=1 // pred_check_branch
      %59 = sbr.rel (0) target = $region29
    $region28: #{tpu_custom_call.1} parent=1 // pred_region
      _
    $region29: #{tpu_custom_call.1} parent=1 // pred_fallthru
      _
    // Predicated region
    $region30: #{tpu_custom_call.1} parent=1 // pred_check
      _
    $region31: #{tpu_custom_call.1} parent=1 // pred_check_branch
      %61 = sbr.rel (0) target = $region33
    $region32: #{tpu_custom_call.1} parent=1 // pred_region
      %62 = dma.done [#allocation4], 1024
    $region33: #{tpu_custom_call.1} parent=1 // pred_fallthru
      _
    // Predicated region
    $region34: #{tpu_custom_call.1} parent=1 // pred_check
      _
    $region35: #{tpu_custom_call.1} parent=1 // pred_check_branch
      %64 = sbr.rel (0) target = $region37
    $region36: #{tpu_custom_call.1} parent=1 // pred_region
      %65 = dma.done [#allocation7], 1024
    $region37: #{tpu_custom_call.1} parent=1 // pred_fallthru
      _
    // Predicated region
    $region38: #{tpu_custom_call.1} parent=1 // pred_check
      _
    $region39: #{tpu_custom_call.1} parent=1 // pred_check_branch
      %67 = sbr.rel (0) target = $region41
    $region40: #{tpu_custom_call.1} parent=1 // pred_region
      %68 = dma.done [#allocation7], 1024
    $region41: #{tpu_custom_call.1} parent=1 // pred_fallthru
      _
    %v70 = vld [vmem:[#allocation3] sm:$0xf]
    %v71 = vld [vmem:[#allocation3 + $0x4] sm:$0xf]
    %v72 = vld [vmem:[#allocation3 + $0x8] sm:$0xf]
    %v73 = vld [vmem:[#allocation3 + $0xc] sm:$0xf]
    %v74 = vld [vmem:[#allocation3 + $0x10] sm:$0xf]
    %v75 = vld [vmem:[#allocation3 + $0x14] sm:$0xf]
    %v76 = vld [vmem:[#allocation3 + $0x18] sm:$0xf]
    %v77 = vld [vmem:[#allocation3 + $0x1c] sm:$0xf]
    %v78 = vld [vmem:[#allocation3 + $0x20] sm:$0xf]
    %v79 = vld [vmem:[#allocation3 + $0x24] sm:$0xf]
    %v80 = vld [vmem:[#allocation3 + $0x28] sm:$0xf]
    %v81 = vld [vmem:[#allocation3 + $0x2c] sm:$0xf]
    %v82 = vld [vmem:[#allocation3 + $0x30] sm:$0xf]
    %v83 = vld [vmem:[#allocation3 + $0x34] sm:$0xf]
    %v84 = vld [vmem:[#allocation3 + $0x38] sm:$0xf]
    %v85 = vld [vmem:[#allocation3 + $0x3c] sm:$0xf]
    %v86 = vld [vmem:[#allocation6] sm:$0xf]
    %v87 = vld [vmem:[#allocation6 + $0x4] sm:$0xf]
    %v88 = vld [vmem:[#allocation6 + $0x8] sm:$0xf]
    %v89 = vld [vmem:[#allocation6 + $0xc] sm:$0xf]
    %v90 = vld [vmem:[#allocation6 + $0x10] sm:$0xf]
    %v91 = vld [vmem:[#allocation6 + $0x14] sm:$0xf]
    %v92 = vld [vmem:[#allocation6 + $0x18] sm:$0xf]
    %v93 = vld [vmem:[#allocation6 + $0x1c] sm:$0xf]
    %v94 = vld [vmem:[#allocation6 + $0x20] sm:$0xf]
    %v95 = vld [vmem:[#allocation6 + $0x24] sm:$0xf]
    %v96 = vld [vmem:[#allocation6 + $0x28] sm:$0xf]
    %v97 = vld [vmem:[#allocation6 + $0x2c] sm:$0xf]
    %v98 = vld [vmem:[#allocation6 + $0x30] sm:$0xf]
    %v99 = vld [vmem:[#allocation6 + $0x34] sm:$0xf]
    %v100 = vld [vmem:[#allocation6 + $0x38] sm:$0xf]
    %v101 = vld [vmem:[#allocation6 + $0x3c] sm:$0xf]
    %v102 = vld [vmem:[%s2] sm:$0x1]
    %v104 = vlaneseq
    %v105 = vshrl.u32 %v104, 7
    %v106 = vsub.s32 0, %v105
    %v107 = vrot.slane %v102, %v106
    %v125 = vunpack.c.l.b16 %v70
    %v126 = vunpack.c.l.b16 %v71
    %v127 = vunpack.c.l.b16 %v72
    %v128 = vunpack.c.l.b16 %v73
    %v129 = vunpack.c.l.b16 %v74
    %v130 = vunpack.c.l.b16 %v75
    %v131 = vunpack.c.l.b16 %v76
    %v132 = vunpack.c.l.b16 %v77
    %v133 = vunpack.c.l.b16 %v78
    %v134 = vunpack.c.l.b16 %v79
    %v135 = vunpack.c.l.b16 %v80
    %v136 = vunpack.c.l.b16 %v81
    %v137 = vunpack.c.l.b16 %v82
    %v138 = vunpack.c.l.b16 %v83
    %v139 = vunpack.c.l.b16 %v84
    %v140 = vunpack.c.l.b16 %v85
    %v141 = vpack.c.b16 %v126, %v125
    %v142 = vpack.c.b16 %v128, %v127
    %v143 = vpack.c.b16 %v130, %v129
    %v144 = vpack.c.b16 %v132, %v131
    %v145 = vpack.c.b16 %v134, %v133
    %v146 = vpack.c.b16 %v136, %v135
    %v147 = vpack.c.b16 %v138, %v137
    %v148 = vpack.c.b16 %v140, %v139
    %v173 = vunpack.c.l.b16 %v86
    %v174 = vunpack.c.l.b16 %v87
    %v175 = vunpack.c.l.b16 %v88
    %v176 = vunpack.c.l.b16 %v89
    %v177 = vunpack.c.l.b16 %v90
    %v178 = vunpack.c.l.b16 %v91
    %v179 = vunpack.c.l.b16 %v92
    %v180 = vunpack.c.l.b16 %v93
    %v181 = vunpack.c.l.b16 %v94
    %v182 = vunpack.c.l.b16 %v95
    %v183 = vunpack.c.l.b16 %v96
    %v184 = vunpack.c.l.b16 %v97
    %v185 = vunpack.c.l.b16 %v98
    %v186 = vunpack.c.l.b16 %v99
    %v187 = vunpack.c.l.b16 %v100
    %v188 = vunpack.c.l.b16 %v101
    %v189 = vpack.c.b16 %v174, %v173
    %v190 = vpack.c.b16 %v176, %v175
    %v191 = vpack.c.b16 %v178, %v177
    %v192 = vpack.c.b16 %v180, %v179
    %v193 = vpack.c.b16 %v182, %v181
    %v194 = vpack.c.b16 %v184, %v183
    %v195 = vpack.c.b16 %v186, %v185
    %v196 = vpack.c.b16 %v188, %v187
    %205 = vmatprep.subr.bf16.mxu0 0
    %206 = vmatpush1.bf16.msra.mxu0 %v189
    %207 = vmatprep.subr.bf16.mxu0 0
    %208 = vmatpush1.bf16.msra.mxu0 %v190
    %209 = vmatprep.subr.bf16.mxu0 0
    %210 = vmatpush1.bf16.msra.mxu0 %v191
    %211 = vmatprep.subr.bf16.mxu0 0
    %212 = vmatpush1.bf16.msra.mxu0 %v192
    %213 = vmatprep.subr.bf16.mxu0 0
    %214 = vmatpush1.bf16.msra.mxu0 %v193
    %215 = vmatprep.subr.bf16.mxu0 0
    %216 = vmatpush1.bf16.msra.mxu0 %v194
    %217 = vmatprep.subr.bf16.mxu0 0
    %218 = vmatpush1.bf16.msra.mxu0 %v195
    %219 = vmatprep.subr.bf16.mxu0 0
    %220 = vmatpush1.bf16.msra.mxu0 %v196
    %221 = vmatprep.subr.bf16.mxu0 0
    %222 = vmatpush1.bf16.msra.mxu0 0
    %223 = vmatprep.subr.bf16.mxu0 0
    %224 = vmatpush1.bf16.msra.mxu0 0
    %225 = vmatprep.subr.bf16.mxu0 0
    %226 = vmatpush1.bf16.msra.mxu0 0
    %227 = vmatprep.subr.bf16.mxu0 0
    %228 = vmatpush1.bf16.msra.mxu0 0
    %229 = vmatprep.subr.bf16.mxu0 0
    %230 = vmatpush1.bf16.msra.mxu0 0
    %231 = vmatprep.subr.bf16.mxu0 0
    %232 = vmatpush1.bf16.msra.mxu0 0
    %233 = vmatprep.subr.bf16.mxu0 0
    %234 = vmatpush1.bf16.msra.mxu0 0
    %235 = vmatprep.subr.bf16.mxu0 0
    %236 = vmatpush1.bf16.msra.mxu0 0
    %237 = vmatprep.mubr.bf16.mxu0 0
    %238 = vmatmul.mubr.bf16.gmra.mrb[0].mxu0 %v141
    %v239 = vpop.f32.mrb[0].mxu0
    %v240 = vadd.f32 %v107, %v239
    %v241 = vpop.f32.mrb[0].mxu0
    %v242 = vpop.f32.mrb[0].mxu0
    %v243 = vadd.f32 %v107, %v242
    %v244 = vpop.f32.mrb[0].mxu0
    %245 = vmatprep.mubr.bf16.mxu0 0
    %246 = vmatmul.mubr.bf16.gmra.mrb[0].mxu0 %v142
    %v247 = vpop.f32.mrb[0].mxu0
    %v248 = vadd.f32 %v107, %v247
    %v249 = vpop.f32.mrb[0].mxu0
    %v250 = vpop.f32.mrb[0].mxu0
    %v251 = vadd.f32 %v107, %v250
    %v252 = vpop.f32.mrb[0].mxu0
    %253 = vmatprep.mubr.bf16.mxu0 0
    %254 = vmatmul.mubr.bf16.gmra.mrb[0].mxu0 %v143
    %v255 = vpop.f32.mrb[0].mxu0
    %v256 = vadd.f32 %v107, %v255
    %v257 = vpop.f32.mrb[0].mxu0
    %v258 = vpop.f32.mrb[0].mxu0
    %v259 = vadd.f32 %v107, %v258
    %v260 = vpop.f32.mrb[0].mxu0
    %261 = vmatprep.mubr.bf16.mxu0 0
    %262 = vmatmul.mubr.bf16.gmra.mrb[0].mxu0 %v144
    %v263 = vpop.f32.mrb[0].mxu0
    %v264 = vadd.f32 %v107, %v263
    %v265 = vpop.f32.mrb[0].mxu0
    %v266 = vpop.f32.mrb[0].mxu0
    %v267 = vadd.f32 %v107, %v266
    %v268 = vpop.f32.mrb[0].mxu0
    %269 = vmatprep.mubr.bf16.mxu0 0
    %270 = vmatmul.mubr.bf16.gmra.mrb[0].mxu0 %v145
    %v271 = vpop.f32.mrb[0].mxu0
    %v272 = vadd.f32 %v107, %v271
    %v273 = vpop.f32.mrb[0].mxu0
    %v274 = vpop.f32.mrb[0].mxu0
    %v275 = vadd.f32 %v107, %v274
    %v276 = vpop.f32.mrb[0].mxu0
    %277 = vmatprep.mubr.bf16.mxu0 0
    %278 = vmatmul.mubr.bf16.gmra.mrb[0].mxu0 %v146
    %v279 = vpop.f32.mrb[0].mxu0
    %v280 = vadd.f32 %v107, %v279
    %v281 = vpop.f32.mrb[0].mxu0
    %v282 = vpop.f32.mrb[0].mxu0
    %v283 = vadd.f32 %v107, %v282
    %v284 = vpop.f32.mrb[0].mxu0
    %285 = vmatprep.mubr.bf16.mxu0 0
    %286 = vmatmul.mubr.bf16.gmra.mrb[0].mxu0 %v147
    %v287 = vpop.f32.mrb[0].mxu0
    %v288 = vadd.f32 %v107, %v287
    %v289 = vpop.f32.mrb[0].mxu0
    %v290 = vpop.f32.mrb[0].mxu0
    %v291 = vadd.f32 %v107, %v290
    %v292 = vpop.f32.mrb[0].mxu0
    %293 = vmatprep.mubr.bf16.mxu0 0
    %294 = vmatmul.mubr.bf16.gmra.mrb[0].mxu0 %v148
    %v295 = vpop.f32.mrb[0].mxu0
    %v296 = vadd.f32 %v107, %v295
    %v297 = vpop.f32.mrb[0].mxu0
    %v298 = vpop.f32.mrb[0].mxu0
    %v299 = vadd.f32 %v107, %v298
    %v300 = vpop.f32.mrb[0].mxu0
    %301 = vdwg.mxu0
    %v302 = vmul.f32 %v240, 0.2
    %v303 = vmul.f32 %v243, 0.2
    %v304 = vmul.f32 %v248, 0.2
    %v305 = vmul.f32 %v251, 0.2
    %v306 = vmul.f32 %v256, 0.2
    %v307 = vmul.f32 %v259, 0.2
    %v308 = vmul.f32 %v264, 0.2
    %v309 = vmul.f32 %v267, 0.2
    %v310 = vmul.f32 %v272, 0.2
    %v311 = vmul.f32 %v275, 0.2
    %v312 = vmul.f32 %v280, 0.2
    %v313 = vmul.f32 %v283, 0.2
    %v314 = vmul.f32 %v288, 0.2
    %v315 = vmul.f32 %v291, 0.2
    %v316 = vmul.f32 %v296, 0.2
    %v317 = vmul.f32 %v299, 0.2
    %v318 = vmax.f32 %v240, %v302
    %v319 = vmax.f32 %v243, %v303
    %v320 = vmax.f32 %v248, %v304
    %v321 = vmax.f32 %v251, %v305
    %v322 = vmax.f32 %v256, %v306
    %v323 = vmax.f32 %v259, %v307
    %v324 = vmax.f32 %v264, %v308
    %v325 = vmax.f32 %v267, %v309
    %v326 = vmax.f32 %v272, %v310
    %v327 = vmax.f32 %v275, %v311
    %v328 = vmax.f32 %v280, %v312
    %v329 = vmax.f32 %v283, %v313
    %v330 = vmax.f32 %v288, %v314
    %v331 = vmax.f32 %v291, %v315
    %v332 = vmax.f32 %v296, %v316
    %v333 = vmax.f32 %v299, %v317
    %v334 = vpack.c.bf16 %v319, %v318
    %v335 = vpack.c.bf16 %v321, %v320
    %v336 = vpack.c.bf16 %v323, %v322
    %v337 = vpack.c.bf16 %v325, %v324
    %v338 = vpack.c.bf16 %v327, %v326
    %v339 = vpack.c.bf16 %v329, %v328
    %v340 = vpack.c.bf16 %v331, %v330
    %v341 = vpack.c.bf16 %v333, %v332
    %v342 = vld [vmem:[#allocation8] sm:$0xf]
    %v343 = vld [vmem:[#allocation8 + $0x4] sm:$0xf]
    %v344 = vld [vmem:[#allocation8 + $0x8] sm:$0xf]
    %v345 = vld [vmem:[#allocation8 + $0xc] sm:$0xf]
    %v346 = vld [vmem:[#allocation8 + $0x10] sm:$0xf]
    %v347 = vld [vmem:[#allocation8 + $0x14] sm:$0xf]
    %v348 = vld [vmem:[#allocation8 + $0x18] sm:$0xf]
    %v349 = vld [vmem:[#allocation8 + $0x1c] sm:$0xf]
    %v350 = vld [vmem:[#allocation8 + $0x20] sm:$0xf]
    %v351 = vld [vmem:[#allocation8 + $0x24] sm:$0xf]
    %v352 = vld [vmem:[#allocation8 + $0x28] sm:$0xf]
    %v353 = vld [vmem:[#allocation8 + $0x2c] sm:$0xf]
    %v354 = vld [vmem:[#allocation8 + $0x30] sm:$0xf]
    %v355 = vld [vmem:[#allocation8 + $0x34] sm:$0xf]
    %v356 = vld [vmem:[#allocation8 + $0x38] sm:$0xf]
    %v357 = vld [vmem:[#allocation8 + $0x3c] sm:$0xf]
    %v358 = vld [vmem:[%s4] sm:$0x1]
    %v360 = vlaneseq
    %v361 = vshrl.u32 %v360, 7
    %v362 = vsub.s32 0, %v361
    %v363 = vrot.slane %v358, %v362
    %v381 = vunpack.c.l.b16 %v342
    %v382 = vunpack.c.l.b16 %v343
    %v383 = vunpack.c.l.b16 %v344
    %v384 = vunpack.c.l.b16 %v345
    %v385 = vunpack.c.l.b16 %v346
    %v386 = vunpack.c.l.b16 %v347
    %v387 = vunpack.c.l.b16 %v348
    %v388 = vunpack.c.l.b16 %v349
    %v389 = vunpack.c.l.b16 %v350
    %v390 = vunpack.c.l.b16 %v351
    %v391 = vunpack.c.l.b16 %v352
    %v392 = vunpack.c.l.b16 %v353
    %v393 = vunpack.c.l.b16 %v354
    %v394 = vunpack.c.l.b16 %v355
    %v395 = vunpack.c.l.b16 %v356
    %v396 = vunpack.c.l.b16 %v357
    %v397 = vpack.c.b16 %v382, %v381
    %v398 = vpack.c.b16 %v384, %v383
    %v399 = vpack.c.b16 %v386, %v385
    %v400 = vpack.c.b16 %v388, %v387
    %v401 = vpack.c.b16 %v390, %v389
    %v402 = vpack.c.b16 %v392, %v391
    %v403 = vpack.c.b16 %v394, %v393
    %v404 = vpack.c.b16 %v396, %v395
    %413 = vmatprep.subr.bf16.mxu0 0
    %414 = vmatpush1.bf16.msra.mxu0 %v397
    %415 = vmatprep.subr.bf16.mxu0 0
    %416 = vmatpush1.bf16.msra.mxu0 %v398
    %417 = vmatprep.subr.bf16.mxu0 0
    %418 = vmatpush1.bf16.msra.mxu0 %v399
    %419 = vmatprep.subr.bf16.mxu0 0
    %420 = vmatpush1.bf16.msra.mxu0 %v400
    %421 = vmatprep.subr.bf16.mxu0 0
    %422 = vmatpush1.bf16.msra.mxu0 %v401
    %423 = vmatprep.subr.bf16.mxu0 0
    %424 = vmatpush1.bf16.msra.mxu0 %v402
    %425 = vmatprep.subr.bf16.mxu0 0
    %426 = vmatpush1.bf16.msra.mxu0 %v403
    %427 = vmatprep.subr.bf16.mxu0 0
    %428 = vmatpush1.bf16.msra.mxu0 %v404
    %429 = vmatprep.subr.bf16.mxu0 0
    %430 = vmatpush1.bf16.msra.mxu0 0
    %431 = vmatprep.subr.bf16.mxu0 0
    %432 = vmatpush1.bf16.msra.mxu0 0
    %433 = vmatprep.subr.bf16.mxu0 0
    %434 = vmatpush1.bf16.msra.mxu0 0
    %435 = vmatprep.subr.bf16.mxu0 0
    %436 = vmatpush1.bf16.msra.mxu0 0
    %437 = vmatprep.subr.bf16.mxu0 0
    %438 = vmatpush1.bf16.msra.mxu0 0
    %439 = vmatprep.subr.bf16.mxu0 0
    %440 = vmatpush1.bf16.msra.mxu0 0
    %441 = vmatprep.subr.bf16.mxu0 0
    %442 = vmatpush1.bf16.msra.mxu0 0
    %443 = vmatprep.subr.bf16.mxu0 0
    %444 = vmatpush1.bf16.msra.mxu0 0
    %445 = vmatprep.mubr.bf16.mxu0 0
    %446 = vmatmul.mubr.bf16.gmra.mrb[0].mxu0 %v334
    %v447 = vpop.f32.mrb[0].mxu0
    %v448 = vadd.f32 %v363, %v447
    %v449 = vpop.f32.mrb[0].mxu0
    %v450 = vpop.f32.mrb[0].mxu0
    %v451 = vadd.f32 %v363, %v450
    %v452 = vpop.f32.mrb[0].mxu0
    %453 = vmatprep.mubr.bf16.mxu0 0
    %454 = vmatmul.mubr.bf16.gmra.mrb[0].mxu0 %v335
    %v455 = vpop.f32.mrb[0].mxu0
    %v456 = vadd.f32 %v363, %v455
    %v457 = vpop.f32.mrb[0].mxu0
    %v458 = vpop.f32.mrb[0].mxu0
    %v459 = vadd.f32 %v363, %v458
    %v460 = vpop.f32.mrb[0].mxu0
    %461 = vmatprep.mubr.bf16.mxu0 0
    %462 = vmatmul.mubr.bf16.gmra.mrb[0].mxu0 %v336
    %v463 = vpop.f32.mrb[0].mxu0
    %v464 = vadd.f32 %v363, %v463
    %v465 = vpop.f32.mrb[0].mxu0
    %v466 = vpop.f32.mrb[0].mxu0
    %v467 = vadd.f32 %v363, %v466
    %v468 = vpop.f32.mrb[0].mxu0
    %469 = vmatprep.mubr.bf16.mxu0 0
    %470 = vmatmul.mubr.bf16.gmra.mrb[0].mxu0 %v337
    %v471 = vpop.f32.mrb[0].mxu0
    %v472 = vadd.f32 %v363, %v471
    %v473 = vpop.f32.mrb[0].mxu0
    %v474 = vpop.f32.mrb[0].mxu0
    %v475 = vadd.f32 %v363, %v474
    %v476 = vpop.f32.mrb[0].mxu0
    %477 = vmatprep.mubr.bf16.mxu0 0
    %478 = vmatmul.mubr.bf16.gmra.mrb[0].mxu0 %v338
    %v479 = vpop.f32.mrb[0].mxu0
    %v480 = vadd.f32 %v363, %v479
    %v481 = vpop.f32.mrb[0].mxu0
    %v482 = vpop.f32.mrb[0].mxu0
    %v483 = vadd.f32 %v363, %v482
    %v484 = vpop.f32.mrb[0].mxu0
    %485 = vmatprep.mubr.bf16.mxu0 0
    %486 = vmatmul.mubr.bf16.gmra.mrb[0].mxu0 %v339
    %v487 = vpop.f32.mrb[0].mxu0
    %v488 = vadd.f32 %v363, %v487
    %v489 = vpop.f32.mrb[0].mxu0
    %v490 = vpop.f32.mrb[0].mxu0
    %v491 = vadd.f32 %v363, %v490
    %v492 = vpop.f32.mrb[0].mxu0
    %493 = vmatprep.mubr.bf16.mxu0 0
    %494 = vmatmul.mubr.bf16.gmra.mrb[0].mxu0 %v340
    %v495 = vpop.f32.mrb[0].mxu0
    %v496 = vadd.f32 %v363, %v495
    %v497 = vpop.f32.mrb[0].mxu0
    %v498 = vpop.f32.mrb[0].mxu0
    %v499 = vadd.f32 %v363, %v498
    %v500 = vpop.f32.mrb[0].mxu0
    %501 = vmatprep.mubr.bf16.mxu0 0
    %502 = vmatmul.mubr.bf16.gmra.mrb[0].mxu0 %v341
    %v503 = vpop.f32.mrb[0].mxu0
    %v504 = vadd.f32 %v363, %v503
    %v505 = vpop.f32.mrb[0].mxu0
    %v506 = vpop.f32.mrb[0].mxu0
    %v507 = vadd.f32 %v363, %v506
    %v508 = vpop.f32.mrb[0].mxu0
    %509 = vdwg.mxu0
    %v510 = vmul.f32 %v448, 0.2
    %v511 = vmul.f32 %v451, 0.2
    %v512 = vmul.f32 %v456, 0.2
    %v513 = vmul.f32 %v459, 0.2
    %v514 = vmul.f32 %v464, 0.2
    %v515 = vmul.f32 %v467, 0.2
    %v516 = vmul.f32 %v472, 0.2
    %v517 = vmul.f32 %v475, 0.2
    %v518 = vmul.f32 %v480, 0.2
    %v519 = vmul.f32 %v483, 0.2
    %v520 = vmul.f32 %v488, 0.2
    %v521 = vmul.f32 %v491, 0.2
    %v522 = vmul.f32 %v496, 0.2
    %v523 = vmul.f32 %v499, 0.2
    %v524 = vmul.f32 %v504, 0.2
    %v525 = vmul.f32 %v507, 0.2
    %v526 = vmax.f32 %v448, %v510
    %v527 = vmax.f32 %v451, %v511
    %v528 = vmax.f32 %v456, %v512
    %v529 = vmax.f32 %v459, %v513
    %v530 = vmax.f32 %v464, %v514
    %v531 = vmax.f32 %v467, %v515
    %v532 = vmax.f32 %v472, %v516
    %v533 = vmax.f32 %v475, %v517
    %v534 = vmax.f32 %v480, %v518
    %v535 = vmax.f32 %v483, %v519
    %v536 = vmax.f32 %v488, %v520
    %v537 = vmax.f32 %v491, %v521
    %v538 = vmax.f32 %v496, %v522
    %v539 = vmax.f32 %v499, %v523
    %v540 = vmax.f32 %v504, %v524
    %v541 = vmax.f32 %v507, %v525
    %v542 = vld [vmem:[%s5] sm:$0xf]
    %v543 = vpack.c.bf16 %v527, %v526
    %v544 = vpack.c.bf16 %v529, %v528
    %v545 = vpack.c.bf16 %v531, %v530
    %v546 = vpack.c.bf16 %v533, %v532
    %v547 = vpack.c.bf16 %v535, %v534
    %v548 = vpack.c.bf16 %v537, %v536
    %v549 = vpack.c.bf16 %v539, %v538
    %v550 = vpack.c.bf16 %v541, %v540
    %s551 = sld [smem:[#allocation2]]
    %v552 = vstv %s551
    %553 = vmatprep.subr.bf16.mxu0 0
    %554 = vmatpush1.bf16.xpose.msra.mxu0 %v543
    %555 = vmatprep.subr.bf16.mxu0 0
    %556 = vmatpush1.bf16.xpose.msra.mxu0 %v544
    %557 = vmatprep.subr.bf16.mxu0 0
    %558 = vmatpush1.bf16.xpose.msra.mxu0 %v545
    %559 = vmatprep.subr.bf16.mxu0 0
    %560 = vmatpush1.bf16.xpose.msra.mxu0 %v546
    %561 = vmatprep.subr.bf16.mxu0 0
    %562 = vmatpush1.bf16.xpose.msra.mxu0 %v547
    %563 = vmatprep.subr.bf16.mxu0 0
    %564 = vmatpush1.bf16.xpose.msra.mxu0 %v548
    %565 = vmatprep.subr.bf16.mxu0 0
    %566 = vmatpush1.bf16.xpose.msra.mxu0 %v549
    %567 = vmatprep.subr.bf16.mxu0 0
    %568 = vmatpush1.bf16.xpose.msra.mxu0 %v550
    %569 = vmatprep.subr.bf16.mxu0 0
    %570 = vmatpush1.bf16.xpose.msra.mxu0 0
    %571 = vmatprep.subr.bf16.mxu0 0
    %572 = vmatpush1.bf16.xpose.msra.mxu0 0
    %573 = vmatprep.subr.bf16.mxu0 0
    %574 = vmatpush1.bf16.xpose.msra.mxu0 0
    %575 = vmatprep.subr.bf16.mxu0 0
    %576 = vmatpush1.bf16.xpose.msra.mxu0 0
    %577 = vmatprep.subr.bf16.mxu0 0
    %578 = vmatpush1.bf16.xpose.msra.mxu0 0
    %579 = vmatprep.subr.bf16.mxu0 0
    %580 = vmatpush1.bf16.xpose.msra.mxu0 0
    %581 = vmatprep.subr.bf16.mxu0 0
    %582 = vmatpush1.bf16.xpose.msra.mxu0 0
    %583 = vmatprep.subr.bf16.mxu0 0
    %584 = vmatpush1.bf16.xpose.msra.mxu0 0
    %585 = vmatprep.mubr.bf16.mxu0 0
    %586 = vmatmul.mubr.bf16.gmra.mrb[0].mxu0 %v542
    %v587 = vpop.f32.mrb[0].mxu0
    %v588 = vadd.f32 %v552, %v587
    %v589 = vpop.f32.mrb[0].mxu0
    %v590 = vpop.f32.mrb[0].mxu0
    %v591 = vpop.f32.mrb[0].mxu0
    %592 = vdwg.mxu0
    %v593 = vxor.u32 %v588, 2147483648
    %v594 = vmul.f32 %v593, 1.442695
    %v595 = vpow.pop %v594
    %v596 = vadd.f32 %v595, 1.0
    %v597 = vrcp.pop %v596
    %v598 = vmul.f32 1.0, %v597
    %599 = vst [vmem:[#allocation9] sm:$0xff] %v598
    // Predicated region
    $region42: #{tpu_custom_call.1} parent=1 // pred_check
      _
    $region43: #{tpu_custom_call.1} parent=1 // pred_check_branch
      %601 = sbr.rel (0) target = $region45
    $region44: #{tpu_custom_call.1} parent=1 // pred_region
      %s603 = ssub.s32 128, 128
      %604 = vsyncadd [#allocation5], %s603
      %s606 = sshll.u32 [#allocation9], 4
      %s607 = int_to_ptr.vmem [resolvable:$true] %s606
      %609 = dma.vmem_to_hbm [thread:$0]  %s607, 128, %s7, [#allocation5]
    $region45: #{tpu_custom_call.1} parent=1 // pred_fallthru
      _
    // Predicated region
    $region46: #{tpu_custom_call.1} parent=1 // pred_check
      _
    $region47: #{tpu_custom_call.1} parent=1 // pred_check_branch
      %611 = sbr.rel (0) target = $region49
    $region48: #{tpu_custom_call.1} parent=1 // pred_region
      %612 = dma.done [#allocation5], 128
    $region49: #{tpu_custom_call.1} parent=1 // pred_fallthru
      _
    %613 = vsyncpa [#allocation4], 1
    %614 = vsyncpa [#allocation7], 1
    %615 = vsyncpa [#allocation5], 1

</llo_original>
